<compile_context>
chip_gen: v6e
topology: v6e:2x2x1
jax: 0.10.0
libtpu: 0.0.40
codegen_flags: <defaults>
</compile_context>

<pallas_src>
import functools

import jax
import jax.numpy as jnp
from jax.experimental import pallas as pl
from jax.experimental.pallas import tpu as pltpu


def _causal_conv1d_kernel(x_ref, w_ref, b_ref, o_ref, *scratch_refs,
                          kernel_size, dilation, carry_halo, compute_dtype):
    """One grid step = (batch block, time tile).

    x_ref: (BB, C_in, TL)   w_ref: (C_out, K*C_in)   b_ref: (C_out, 1)
    o_ref: (BB, C_out, TL)  scratch (carry_halo=True): halo (BB, C_in, P)
    """
    halo_ref = scratch_refs[0] if carry_halo else None
    bb, c_in, tl = x_ref.shape
    pad = (kernel_size - 1) * dilation

    if carry_halo:
        # Causal left boundary: zero history on the first time tile.
        @pl.when(pl.program_id(1) == 0)
        def _():
            halo_ref[...] = jnp.zeros_like(halo_ref)

    w = w_ref[...]                 # resident fused weights (C_out, K*C_in)
    bias = b_ref[...]              # (C_out, 1), f32; broadcasts over lanes

    for i in range(bb):            # BB is small & static -> fully unrolled
        x_cur = x_ref[i]           # (C_in, TL)

        if pad == 0:
            xstack = x_cur
        else:
            if carry_halo:
                left = halo_ref[i]                       # (C_in, P) history
            else:
                left = jnp.zeros((c_in, pad), x_cur.dtype)

            # Stack the K shifted taps along the sublane (contraction) axis so
            # the whole conv is ONE (C_out, K*C_in) x (K*C_in, TL) MXU matmul.
            taps = []
            for k in range(kernel_size):
                h = pad - k * dilation          # history columns tap k needs
                if h == 0:
                    taps.append(x_cur)          # last tap: no shift, no copy
                elif h >= tl:
                    taps.append(left[:, k * dilation:k * dilation + tl])
                else:
                    taps.append(jnp.concatenate(
                        [left[:, k * dilation:], x_cur[:, :tl - h]], axis=-1))
            xstack = jnp.concatenate(taps, axis=0) if kernel_size > 1 else taps[0]

        if carry_halo:
            # Stash this tile's last P columns for the next time tile
            # (x_cur is already in registers; halo was read above).
            halo_ref[i] = x_cur[:, tl - pad:]

        if compute_dtype is not None:
            xstack = xstack.astype(compute_dtype)

        acc = jnp.dot(w, xstack, preferred_element_type=jnp.float32)
        acc = acc + bias
        o_ref[i] = acc.astype(o_ref.dtype)


def _pick_time_tile(length, pad, time_tile):
    """length is the lane-padded sequence length (multiple of 128 or short)."""
    if time_tile is not None:
        if length % time_tile != 0:
            raise ValueError("time_tile must divide the (padded) sequence length")
        if length // time_tile > 1:
            if time_tile % 128 != 0:
                raise ValueError("tiled time_tile must be a multiple of 128")
            if time_tile < pad:
                raise ValueError("time_tile must be >= (kernel_size-1)*dilation")
        return time_tile
    if length <= 2048:
        return length                          # single tile, no halo carry
    for cand in (2048, 1024, 512, 256, 128):   # largest lane-dense tile
        if length % cand == 0 and cand >= pad:
            return cand
    return length


def _pick_batch_block(batch):
    """Largest batch block (<= 8) that leaves >= 2 grid entries on the batch
    axis so both TensorCores of a megacore chip get work."""
    for cand in (8, 4, 2):
        if batch % cand == 0 and batch // cand >= 2:
            return cand
    return 1


def causal_conv1d(x, w, b, *, kernel_size, dilation,
                  compute_dtype=None, time_tile=None, batch_block=None):
    """x: (B, C_in, L), w: (C_out, C_in, K), b: (C_out,) -> (B, C_out, 1, L)."""
    B, C_in, L = x.shape
    C_out = w.shape[0]
    P = (kernel_size - 1) * dilation

    # Lane-dense time axis: pad to a multiple of 128 (cropped after the call).
    Lp = L if L % 128 == 0 else ((L + 127) // 128) * 128
    x_in = x if Lp == L else jnp.pad(x, ((0, 0), (0, 0), (0, Lp - L)))

    TL = _pick_time_tile(Lp, P, time_tile)
    NT = Lp // TL
    carry = (NT > 1) and (P > 0)

    BB = batch_block if batch_block is not None else _pick_batch_block(B)
    if B % BB != 0:
        raise ValueError("batch_block must divide the batch size")
    NB = B // BB

    # Fused weight layout: column index = k*C_in + c (matches xstack rows).
    w_fused = jnp.transpose(w, (0, 2, 1)).reshape(C_out, kernel_size * C_in)
    b2d = b.astype(jnp.float32).reshape(C_out, 1)
    if compute_dtype is not None:
        w_fused = w_fused.astype(compute_dtype)   # x stays in its HBM dtype

    kernel = functools.partial(
        _causal_conv1d_kernel,
        kernel_size=kernel_size, dilation=dilation,
        carry_halo=carry, compute_dtype=compute_dtype)

    x_spec = pl.BlockSpec((BB, C_in, TL), lambda bb, tt: (bb, 0, tt))
    w_spec = pl.BlockSpec((C_out, kernel_size * C_in), lambda bb, tt: (0, 0))
    b_spec = pl.BlockSpec((C_out, 1), lambda bb, tt: (0, 0))
    o_spec = pl.BlockSpec((BB, C_out, TL), lambda bb, tt: (bb, 0, tt))

    scratch = [pltpu.VMEM((BB, C_in, P), x_in.dtype)] if carry else []

    # VMEM budget: double-buffered x/out blocks + in-kernel intermediates.
    itemsize = x_in.dtype.itemsize
    budget = 2 * BB * (C_in + C_out) * TL * itemsize
    budget += 2 * (kernel_size * C_in + C_out) * TL * 4      # xstack + acc (f32)
    vmem_limit = int(min(max(32 << 20, 2 * budget), 48 << 20))

    out = pl.pallas_call(
        kernel,
        out_shape=jax.ShapeDtypeStruct((B, C_out, Lp), x.dtype),
        grid_spec=pltpu.PrefetchScalarGridSpec(
            num_scalar_prefetch=0,
            grid=(NB, NT),
            in_specs=[x_spec, w_spec, b_spec],
            out_specs=o_spec,
            scratch_shapes=scratch,
        ),
        compiler_params=pltpu.CompilerParams(
            # Batch axis parallel (megacore); time axis sequential because the
            # halo scratch is carried across it.
            dimension_semantics=("parallel", "arbitrary"),
            vmem_limit_bytes=vmem_limit,
        ),
    )(x_in, w_fused, b2d)

    if Lp != L:
        out = out[:, :, :L]
    # Match PyTorch's final unsqueeze(dim=2).
    return out[:, :, None, :]


def causal_conv1d_reference(x, w, b, *, kernel_size, dilation):
    """Pure-JAX reference with identical semantics (for verification)."""
    P = (kernel_size - 1) * dilation
    y = jax.lax.conv_general_dilated(
        x, w,
        window_strides=(1,),
        padding=[(P, P)],
        rhs_dilation=(dilation,),
        dimension_numbers=("NCH", "OIH", "NCH"),
    )
    y = y + b.reshape(1, -1, 1)
    y = y[:, :, : x.shape[-1]]           # crop trailing P steps -> causal
    return y[:, :, None, :]


# TODO(synk): only the CausalConv1d submodule is kernelized here; the rest of
# TCNFusion (EEGBlock 2D convs, BatchNorm, ELU, AvgPool, Dropout, residual 1x1
# Conv1d, final Linear classifier) is left to standard XLA ops.

if __name__ == "__main__":
    key = jax.random.PRNGKey(0)
    key_a, key_b, key_c = jax.random.split(key, 3)

    def make_inputs(k, B, C_in, C_out, L, K):
        kx, kw, kb = jax.random.split(k, 3)
        x = jax.random.normal(kx, (B, C_in, L), dtype=jnp.float32)
        bound = 1.0 / (C_in * K) ** 0.5       # Conv1d-style init bound
        w = jax.random.uniform(kw, (C_out, C_in, K),
                               minval=-bound, maxval=bound, dtype=jnp.float32)
        b = jax.random.uniform(kb, (C_out,),
                               minval=-bound, maxval=bound, dtype=jnp.float32)
        return x, w, b

    # --- Test 1: small shapes (single lane-padded tile), f32 ---------------
    K, d = 3, 2
    x, w, b = make_inputs(key_a, B=2, C_in=4, C_out=8, L=16, K=K)
    y = jax.block_until_ready(causal_conv1d(x, w, b, kernel_size=K, dilation=d))
    y_ref = causal_conv1d_reference(x, w, b, kernel_size=K, dilation=d)
    assert y.shape == (2, 8, 1, 16)
    assert jnp.allclose(y, y_ref, atol=1e-5, rtol=1e-5)

    # --- Test 2: same shapes, bf16 matmul operands, f32 accumulation -------
    y16 = jax.block_until_ready(
        causal_conv1d(x, w, b, kernel_size=K, dilation=d,
                      compute_dtype=jnp.bfloat16))
    assert jnp.allclose(y16, y_ref, atol=5e-2, rtol=5e-2)

    # --- Test 3: time-tiled path (scratch-carried halo), f32 ---------------
    K, d = 4, 8
    x, w, b = make_inputs(key_b, B=2, C_in=8, C_out=16, L=256, K=K)
    y = jax.block_until_ready(
        causal_conv1d(x, w, b, kernel_size=K, dilation=d, time_tile=128))
    y_ref = causal_conv1d_reference(x, w, b, kernel_size=K, dilation=d)
    assert y.shape == (2, 16, 1, 256)
    assert jnp.allclose(y, y_ref, atol=1e-4, rtol=1e-4)

    # --- Test 4: non-128 length (lane padding) + batch blocking + halo -----
    K, d = 4, 8
    x, w, b = make_inputs(key_c, B=4, C_in=16, C_out=12, L=300, K=K)
    y = jax.block_until_ready(
        causal_conv1d(x, w, b, kernel_size=K, dilation=d, time_tile=128))
    y_ref = causal_conv1d_reference(x, w, b, kernel_size=K, dilation=d)
    assert y.shape == (4, 12, 1, 300)
    assert jnp.allclose(y, y_ref, atol=1e-4, rtol=1e-4)

    print("KERNEL_OK")
</pallas_src>

<mosaic_0001>
module attributes {stable_mosaic.version = 11 : i64} {
  func.func @_causal_conv1d_kernel(%arg0: i32, %arg1: i32, %arg2: memref<1x4x128xf32, #tpu.memory_space<vmem>>, %arg3: memref<8x12xf32, #tpu.memory_space<vmem>>, %arg4: memref<8x1xf32, #tpu.memory_space<vmem>>, %arg5: memref<1x8x128xf32, #tpu.memory_space<vmem>>) attributes {dimension_semantics = [#tpu.dimension_semantics<parallel>, #tpu.dimension_semantics<arbitrary>], iteration_bounds = array<i64: 2, 1>, scalar_prefetch = 0 : i64, scratch_operands = 0 : i64, tpu.core_type = #tpu.core_type<tc>, window_params = [{transform_indices = @transform_0, window_bounds = array<i64: 1, 4, 128>}, {pipeline_mode = #tpu.pipeline_mode<synchronous>, transform_indices = @transform_1, window_bounds = array<i64: 8, 12>}, {pipeline_mode = #tpu.pipeline_mode<synchronous>, transform_indices = @transform_2, window_bounds = array<i64: 8, 1>}, {transform_indices = @transform_3, window_bounds = array<i64: 1, 8, 128>}]} {
    %c0 = arith.constant 0 : index
    %c0_0 = arith.constant 0 : index
    %0 = vector.load %arg3[%c0, %c0_0] : memref<8x12xf32, #tpu.memory_space<vmem>>, vector<8x12xf32>
    %c0_1 = arith.constant 0 : index
    %c0_2 = arith.constant 0 : index
    %1 = vector.load %arg4[%c0_1, %c0_2] : memref<8x1xf32, #tpu.memory_space<vmem>>, vector<8x1xf32>
    %c0_3 = arith.constant 0 : index
    %c0_4 = arith.constant 0 : index
    %c0_5 = arith.constant 0 : index
    %2 = vector.load %arg2[%c0_3, %c0_4, %c0_5] : memref<1x4x128xf32, #tpu.memory_space<vmem>>, vector<1x4x128xf32>
    %3 = vector.shape_cast %2 : vector<1x4x128xf32> to vector<4x128xf32>
    %cst = arith.constant 0.000000e+00 : f32
    %4 = vector.broadcast %cst : f32 to vector<4x4xf32>
    %5 = vector.extract_strided_slice %3 {offsets = [0, 0], sizes = [4, 124], strides = [1, 1]} : vector<4x128xf32> to vector<4x124xf32>
    %6 = tpu.concatenate %4, %5 in 1 : vector<4x4xf32>, vector<4x124xf32> -> vector<4x128xf32>
    %7 = vector.extract_strided_slice %4 {offsets = [0, 2], sizes = [4, 2], strides = [1, 1]} : vector<4x4xf32> to vector<4x2xf32>
    %8 = vector.extract_strided_slice %3 {offsets = [0, 0], sizes = [4, 126], strides = [1, 1]} : vector<4x128xf32> to vector<4x126xf32>
    %9 = tpu.concatenate %7, %8 in 1 : vector<4x2xf32>, vector<4x126xf32> -> vector<4x128xf32>
    %10 = tpu.concatenate %6, %9, %3 in 0 : vector<4x128xf32>, vector<4x128xf32>, vector<4x128xf32> -> vector<12x128xf32>
    %cst_6 = arith.constant dense<0.000000e+00> : vector<8x128xf32>
    %11 = tpu.matmul %0, %10, %cst_6 {dimension_numbers = #tpu.dot_dimension_numbers<[1], [0], [0], [1], [0, 0, 1, 1], [], []>} : vector<8x12xf32>, vector<12x128xf32>, vector<8x128xf32> -> vector<8x128xf32>
    %12 = vector.broadcast %1 : vector<8x1xf32> to vector<8x128xf32>
    %13 = arith.addf %11, %12 : vector<8x128xf32>
    %c0_7 = arith.constant 0 : index
    %c0_8 = arith.constant 0 : index
    %c0_9 = arith.constant 0 : index
    %14 = vector.load %arg5[%c0_7, %c0_8, %c0_9] : memref<1x8x128xf32, #tpu.memory_space<vmem>>, vector<1x8x128xf32>
    %15 = vector.shape_cast %14 : vector<1x8x128xf32> to vector<8x128xf32>
    %16 = vector.shape_cast %13 : vector<8x128xf32> to vector<1x8x128xf32>
    tpu.vector_store %arg5[%c0_7, %c0_8, %c0_9], %16 {strides = array<i32>} : memref<1x8x128xf32, #tpu.memory_space<vmem>>, vector<1x8x128xf32>,
    return
  }
  func.func @transform_0(%arg0: i32, %arg1: i32) -> (i32, i32, i32) {
    %c0_i32 = arith.constant 0 : i32
    %c0_i32_0 = arith.constant 0 : i32
    return %arg0, %c0_i32, %arg1 : i32, i32, i32
  }
  func.func @transform_1(%arg0: i32, %arg1: i32) -> (i32, i32) {
    %c0_i32 = arith.constant 0 : i32
    %c0_i32_0 = arith.constant 0 : i32
    %c0_i32_1 = arith.constant 0 : i32
    return %c0_i32, %c0_i32_0 : i32, i32
  }
  func.func @transform_2(%arg0: i32, %arg1: i32) -> (i32, i32) {
    %c0_i32 = arith.constant 0 : i32
    %c0_i32_0 = arith.constant 0 : i32
    %c0_i32_1 = arith.constant 0 : i32
    return %c0_i32, %c0_i32_0 : i32, i32
  }
  func.func @transform_3(%arg0: i32, %arg1: i32) -> (i32, i32, i32) {
    %c0_i32 = arith.constant 0 : i32
    %c0_i32_0 = arith.constant 0 : i32
    return %arg0, %c0_i32, %arg1 : i32, i32, i32
  }
}

</mosaic_0001>

<llo_original>
// kernel: tpu_custom_call.1
$region0: #{tpu_custom_call.1}
  #allocation0 [shape = 'u32[]', space=smem, size = 0x4, offset = 0x4, fixed_abs, tag = 'smem constant byte address 0x4 - core index']
  #allocation1 [shape = 'u32[144,128]{1,0:T(1,128)}', space=vmem, size = 0x12000, scoped, tag = 'internal scratch']
  %s0 = inlined_call_operand.vmem [shape: f32[2,4,128], index: 0, kind: input, shape index: {}]
  %s1 = inlined_call_operand.hbm [shape: f32[8,12], index: 1, kind: input, shape index: {}]
  %s2 = inlined_call_operand.vmem [shape: f32[8,1], index: 2, kind: input, shape index: {}]
  %s3 = inlined_call_operand.hbm [shape: f32[2,8,128], index: 3, kind: output, shape index: {}]
  %s4 = sld [smem:[#allocation0]]
  $region49: #{tpu_custom_call.1} parent=0
    _
  %s6 = ssub.s32 1, %s4
  %s7 = scalar_select 0, %s6, %s4
  $region1: #{tpu_custom_call.1} parent=0
    #allocation2 [shape = 'u8[4096]{0}', space=vmem, size = 0x1000, scoped, tag = 'input window, operand 1, single buffered']
    #allocation3 [shape = 's32[2]{0}', space=sflag, size = 0x8, scoped, tag = 'scoped memory for tpu_custom_call.1']
    #allocation4 [shape = 's32[2]{0}', space=sflag, size = 0x8, scoped, tag = 'scoped memory for tpu_custom_call.1']
    #allocation5 [shape = 'u8[8192]{0}', space=vmem, size = 0x2000, scoped, tag = 'output window, operand 0']
    %8 = vsyncpa [#allocation3], 0
    %9 = vsyncpa [#allocation4], 0
    %s10 = scalar_lea.sflag [#allocation4], 1
    %11 = vsyncpa %s10, 0
    loop: start=0, step=1, limit=4
    $region2: #{tpu_custom_call.1} parent=1 // loop_pre_header
      _
    $region3: #{tpu_custom_call.1} parent=1 // loop_header
      %s13 = sphi 0, %s17
      %p14 = scmp.ge.s32.totalorder %s13, 4
      %s20 = sphi 0, %s32
      %s21 = sphi 0, %s28
      %s22 = sphi 0, %s20
      %s23 = sphi 0, %s21
      %s24 = sphi 0, %s22
      %s25 = sphi 0, %s23
      %s37 = sphi 0, %s39
      %s40 = sphi 0, %s37
      %s41 = sphi 0, %s40
      %s57 = sphi 0, %s41
      %s61 = sphi 0, %s61
      %s63 = sphi 0, %s61
      %s64 = sphi 0, %s63
      %s78 = sphi 0, %s64
      %s82 = sphi 0, %s82
      %s84 = sphi 0, %s82
      %s85 = sphi 0, %s84
      %s99 = sphi 0, %s85
      %s107 = sphi 0, %s109
      %s110 = sphi 0, %s107
      %s111 = sphi 0, %s110
      %s127 = sphi 0, %s111
    $region4: #{tpu_custom_call.1} parent=1 // loop_header_branch
      %16 = sbr.rel (%p14) target = $region8
    $region5: #{tpu_custom_call.1} parent=1 // loop_body
      %s18 = ssub.s32 %s13, 1
      %s19 = ssub.s32 %s13, 2
      %s26 = sadd.s32 1, %s21
      %p27 = scmp.ge.s32.totalorder %s26, 1
      %s28 = scalar_select %p27, 0, %s26
      %s29 = sadd.s32 1, %s20
      %s30 = scalar_select %p27, %s29, %s20
      %p31 = scmp.ge.s32.totalorder %s30, 2
      %s32 = scalar_select %p31, 0, %s30
      %s33 = ssub.s32 %s20, %s32
      %s34 = ssub.s32 %s21, %s28
      %s35 = sor.u32 %s33, %s34
      %p36 = scmp.eq.s32.totalorder %s35, 0
      %s38 = sadd.s32 %s37, 1
      %s39 = scalar_select %p36, %s37, %s38
      %p42 = pneg %p36
      %p43 = scmp.eq.s32.totalorder %s13, 1
      %p44 = por %p42, %p43
      %p45 = scmp.ne.s32.totalorder %s37, %s40
      %p46 = scmp.eq.s32.totalorder %s13, 0
      %p47 = por %p45, %p46
      %p48 = scmp.ne.s32.totalorder %s37, %s40
      %p49 = scmp.eq.s32.totalorder %s18, 1
      %p50 = por %p48, %p49
      %p51 = scmp.ne.s32.totalorder %s40, %s41
      %p52 = scmp.eq.s32.totalorder %s18, 0
      %p53 = por %p51, %p52
      %p54 = scmp.ne.s32.totalorder %s40, %s41
      %p55 = scmp.eq.s32.totalorder %s19, 1
      %p56 = por %p54, %p55
      %p58 = scmp.ne.s32.totalorder %s41, %s57
      %p59 = scmp.eq.s32.totalorder %s19, 0
      %p60 = por %p58, %p59
      %s62 = sadd.s32 %s61, 1
      %p65 = scmp.eq.s32.totalorder %s13, 1
      %p66 = scmp.ne.s32.totalorder %s61, %s63
      %p67 = scmp.eq.s32.totalorder %s13, 0
      %p68 = por %p66, %p67
      %p69 = scmp.ne.s32.totalorder %s61, %s63
      %p70 = scmp.eq.s32.totalorder %s18, 1
      %p71 = por %p69, %p70
      %p72 = scmp.ne.s32.totalorder %s63, %s64
      %p73 = scmp.eq.s32.totalorder %s18, 0
      %p74 = por %p72, %p73
      %p75 = scmp.ne.s32.totalorder %s63, %s64
      %p76 = scmp.eq.s32.totalorder %s19, 1
      %p77 = por %p75, %p76
      %p79 = scmp.ne.s32.totalorder %s64, %s78
      %p80 = scmp.eq.s32.totalorder %s19, 0
      %p81 = por %p79, %p80
      %s83 = sadd.s32 %s82, 1
      %p86 = scmp.eq.s32.totalorder %s13, 1
      %p87 = scmp.ne.s32.totalorder %s82, %s84
      %p88 = scmp.eq.s32.totalorder %s13, 0
      %p89 = por %p87, %p88
      %p90 = scmp.ne.s32.totalorder %s82, %s84
      %p91 = scmp.eq.s32.totalorder %s18, 1
      %p92 = por %p90, %p91
      %p93 = scmp.ne.s32.totalorder %s84, %s85
      %p94 = scmp.eq.s32.totalorder %s18, 0
      %p95 = por %p93, %p94
      %p96 = scmp.ne.s32.totalorder %s84, %s85
      %p97 = scmp.eq.s32.totalorder %s19, 1
      %p98 = por %p96, %p97
      %p100 = scmp.ne.s32.totalorder %s85, %s99
      %p101 = scmp.eq.s32.totalorder %s19, 0
      %p102 = por %p100, %p101
      %s103 = ssub.s32 %s20, %s32
      %s104 = ssub.s32 %s21, %s28
      %s105 = sor.u32 %s103, %s104
      %p106 = scmp.eq.s32.totalorder %s105, 0
      %s108 = sadd.s32 %s107, 1
      %s109 = scalar_select %p106, %s107, %s108
      %p112 = pneg %p106
      %p113 = scmp.eq.s32.totalorder %s13, 1
      %p114 = por %p112, %p113
      %p115 = scmp.ne.s32.totalorder %s107, %s110
      %p116 = scmp.eq.s32.totalorder %s13, 0
      %p117 = por %p115, %p116
      %p118 = scmp.ne.s32.totalorder %s107, %s110
      %p119 = scmp.eq.s32.totalorder %s18, 1
      %p120 = por %p118, %p119
      %p121 = scmp.ne.s32.totalorder %s110, %s111
      %p122 = scmp.eq.s32.totalorder %s18, 0
      %p123 = por %p121, %p122
      %p124 = scmp.ne.s32.totalorder %s110, %s111
      %p125 = scmp.eq.s32.totalorder %s19, 1
      %p126 = por %p124, %p125
      %p128 = scmp.ne.s32.totalorder %s111, %s127
      %p129 = scmp.eq.s32.totalorder %s19, 0
      %p130 = por %p128, %p129
      %p131 = scmp.le.s32.totalorder 1, %s13
      %p132 = scmp.lt.s32.totalorder %s13, 3
      %p133 = pnand %p131, %p132
      %p134 = pneg %p133
      // Predicated region
      $region9: #{tpu_custom_call.1} parent=5 // pred_check
        _
      $region10: #{tpu_custom_call.1} parent=5 // pred_check_branch
        %136 = sbr.rel (%p133) target = $region12
      $region11: #{tpu_custom_call.1} parent=5 // pred_region
        %s137 = ssub.s32 %s13, 1
        // Predicated region
        $region13: #{tpu_custom_call.1} parent=11 // pred_check
          %p138 = pneg %p74
        $region14: #{tpu_custom_call.1} parent=11 // pred_check_branch
          %140 = sbr.rel (%p138) target = $region16
        $region15: #{tpu_custom_call.1} parent=11 // pred_region
          %s142 = ssub.s32 128, 128
          %143 = vsyncadd [#allocation3], %s142
          %s145 = sshll.u32 [#allocation2], 4
          %s146 = int_to_ptr.vmem [resolvable:$true] %s145
          %148 = dma.hbm_to_vmem [thread:$0]  %s1, 128, %s146, [#allocation3]
        $region16: #{tpu_custom_call.1} parent=11 // pred_fallthru
          _
        // Predicated region
        $region17: #{tpu_custom_call.1} parent=11 // pred_check
          %p149 = pneg %p95
        $region18: #{tpu_custom_call.1} parent=11 // pred_check_branch
          %151 = sbr.rel (%p149) target = $region20
        $region19: #{tpu_custom_call.1} parent=11 // pred_region
          _
        $region20: #{tpu_custom_call.1} parent=11 // pred_fallthru
          _
      $region12: #{tpu_custom_call.1} parent=5 // pred_fallthru
        _
      %p152 = scmp.lt.s32.totalorder %s13, 2
      // Predicated region
      $region21: #{tpu_custom_call.1} parent=5 // pred_check
        %p153 = pneg %p152
      $region22: #{tpu_custom_call.1} parent=5 // pred_check_branch
        %155 = sbr.rel (%p153) target = $region24
      $region23: #{tpu_custom_call.1} parent=5 // pred_region
        // Predicated region
        $region25: #{tpu_custom_call.1} parent=23 // pred_check
          %p156 = pneg %p47
        $region26: #{tpu_custom_call.1} parent=23 // pred_check_branch
          %158 = sbr.rel (%p156) target = $region28
        $region27: #{tpu_custom_call.1} parent=23 // pred_region
          %p159 = scmp.lt.s32.totalorder %s20, 1
          %s160 = scalar_select %p159, %s20, 1
          %p161 = scmp.lt.s32.totalorder %s21, 0
          %s162 = scalar_select %p161, %s21, 0
          %s163 = sadd.s32 %s162, %s160
          %s164 = smul.addr %s163, 4
          %s165 = scalar_lea.vmem %s0, %s164
        $region28: #{tpu_custom_call.1} parent=23 // pred_fallthru
          _
      $region24: #{tpu_custom_call.1} parent=5 // pred_fallthru
        _
      %p166 = scmp.le.s32.totalorder 1, %s13
      %p167 = scmp.lt.s32.totalorder %s13, 3
      %p168 = pnand %p166, %p167
      %p169 = pneg %p168
      // Predicated region
      $region29: #{tpu_custom_call.1} parent=5 // pred_check
        _
      $region30: #{tpu_custom_call.1} parent=5 // pred_check_branch
        %171 = sbr.rel (%p168) target = $region32
      $region31: #{tpu_custom_call.1} parent=5 // pred_region
        %s172 = ssub.s32 %s13, 1
        // Predicated region
        $region33: #{tpu_custom_call.1} parent=31 // pred_check
          %p173 = pneg %p74
        $region34: #{tpu_custom_call.1} parent=31 // pred_check_branch
          %175 = sbr.rel (%p173) target = $region36
        $region35: #{tpu_custom_call.1} parent=31 // pred_region
          %176 = dma.done [#allocation3], 128
        $region36: #{tpu_custom_call.1} parent=31 // pred_fallthru
          _
        %p177 = scmp.lt.s32.totalorder %s22, 1
        %s178 = scalar_select %p177, %s22, 1
        %p179 = scmp.lt.s32.totalorder %s23, 0
        %s180 = scalar_select %p179, %s23, 0
        %s181 = sadd.s32 %s180, %s178
        %s182 = smul.addr %s181, 4
        %s183 = scalar_lea.vmem %s0, %s182
        %p184 = pneg %p53
        %p185 = pneg %p50
        %p186 = pneg %p74
        %p187 = pneg %p71
        %p188 = pneg %p95
        %p189 = pneg %p92
        %p190 = pneg %p123
        %p191 = pneg %p120
        %s192 = sand.u32 %s110, 1
        %s193 = scalar_lea.sflag [#allocation4], %s192
        %s194 = sand.u32 %s110, 1
        %s195 = smul.addr %s194, 8
        %s196 = scalar_lea.vmem [#allocation5], %s195
        %p197 = scmp.lt.s32.totalorder %s22, 1
        %s198 = scalar_select %p197, %s22, 1
        %p199 = scmp.lt.s32.totalorder %s23, 0
        %s200 = scalar_select %p199, %s23, 0
        %s201 = sadd.s32 %s200, %s198
        %s202 = smul.addr %s201, 4
        %s203 = scalar_lea.vmem %s0, %s202
        %v204 = vld [vmem:[#allocation2] sm:$0xff]
        %v205 = vld [vmem:[%s2] sm:$0xff]
        %v206 = vld [vmem:[%s203] sm:$0xf]
        %208 = vrot.lane.b32.xlu0 %v206, 4
        %v209 = vpop.permute.xlu0 %208
        %vm211 = vcmask 31744
        %v212 = vsel %vm211, 0.0, %v209
        %213 = vrot.lane.b32.xlu0 %v206, 2
        %v214 = vpop.permute.xlu0 %213
        %vm216 = vcmask 15360
        %v217 = vsel %vm216, 0.0, %v214
        %v219 = vrot.slane %v217, 4
        %vm221 = vcmask 1043456
        %v222 = vsel %vm221, %v212, %v219
        %224 = vset.pattern.permute.xlu0 0
        %225 = vperm.xlu0 %224, %v205
        %v226 = vpop.permute.xlu0 %225
        %vm228 = vcmask 97280
        %v230 = vsel %vm228, %v204, 0
        %v232 = vsel %vm221, %v206, 0
        %234 = vmatprep.subr.mxu0 0.0
        %235 = vmatpush1.msra.mxu0 0.0
        %236 = vmatprep.subr.mxu0 0.0
        %237 = vmatpush1.msra.mxu0 0.0
        %238 = vmatprep.subr.mxu0 0.0
        %239 = vmatpush1.msra.mxu0 0.0
        %240 = vmatprep.subr.mxu0 0.0
        %241 = vmatpush1.msra.mxu0 0.0
        %242 = vmatprep.subr.mxu0 0.0
        %243 = vmatpush1.msra.mxu0 0.0
        %244 = vmatprep.subr.mxu0 0.0
        %245 = vmatpush1.msra.mxu0 0.0
        %246 = vmatprep.subr.mxu0 0.0
        %247 = vmatpush1.msra.mxu0 0.0
        %248 = vmatprep.subr.mxu0 0.0
        %249 = vmatpush1.msra.mxu0 0.0
        %250 = vmatprep.subr.mxu0 0.0
        %251 = vmatpush1.msra.mxu0 0.0
        %252 = vmatprep.subr.mxu0 0.0
        %253 = vmatpush1.msra.mxu0 0.0
        %254 = vmatprep.subr.mxu0 0.0
        %255 = vmatpush1.msra.mxu0 0.0
        %256 = vmatprep.subr.mxu0 0.0
        %257 = vmatpush1.msra.mxu0 0.0
        %258 = vmatprep.subr.mxu0 0.0
        %259 = vmatpush1.msra.mxu0 0.0
        %260 = vmatprep.subr.mxu0 0.0
        %261 = vmatpush1.msra.mxu0 0.0
        %262 = vmatprep.subr.mxu0 0.0
        %263 = vmatpush1.msra.mxu0 %v232
        %264 = vmatprep.subr.mxu0 0.0
        %265 = vmatpush1.msra.mxu0 %v222
        %266 = vmatprep.subr.mxu0 0.0
        %267 = vmatpush2.msra.mxu0 0.0
        %268 = vmatprep.subr.mxu0 0.0
        %269 = vmatpush2.msra.mxu0 0.0
        %270 = vmatprep.subr.mxu0 0.0
        %271 = vmatpush2.msra.mxu0 0.0
        %272 = vmatprep.subr.mxu0 0.0
        %273 = vmatpush2.msra.mxu0 0.0
        %274 = vmatprep.subr.mxu0 0.0
        %275 = vmatpush2.msra.mxu0 0.0
        %276 = vmatprep.subr.mxu0 0.0
        %277 = vmatpush2.msra.mxu0 0.0
        %278 = vmatprep.subr.mxu0 0.0
        %279 = vmatpush2.msra.mxu0 0.0
        %280 = vmatprep.subr.mxu0 0.0
        %281 = vmatpush2.msra.mxu0 0.0
        %282 = vmatprep.subr.mxu0 0.0
        %283 = vmatpush2.msra.mxu0 0.0
        %284 = vmatprep.subr.mxu0 0.0
        %285 = vmatpush2.msra.mxu0 0.0
        %286 = vmatprep.subr.mxu0 0.0
        %287 = vmatpush2.msra.mxu0 0.0
        %288 = vmatprep.subr.mxu0 0.0
        %289 = vmatpush2.msra.mxu0 0.0
        %290 = vmatprep.subr.mxu0 0.0
        %291 = vmatpush2.msra.mxu0 0.0
        %292 = vmatprep.subr.mxu0 0.0
        %293 = vmatpush2.msra.mxu0 0.0
        %294 = vmatprep.subr.mxu0 0.0
        %295 = vmatpush2.msra.mxu0 0.0
        %296 = vmatprep.subr.mxu0 0.0
        %297 = vmatpush2.msra.mxu0 0.0
        %298 = vmatprep.mubr.f32.mxu0 0.0
        %299 = vmatmul.mubr.f32.gmra.mxu0 %v230
        %v300 = vpop.f32.mrf.mxu0
        %v301 = vadd.f32 %v226, %v300
        %v302 = vpop.f32.mrf.mxu0
        %303 = vdwg.mxu0
        %304 = vst [vmem:[%s196] sm:$0xff] %v301
        %s305 = sand.u32 %s110, 1
        %s306 = scalar_lea.sflag [#allocation4], %s305
        %s307 = sand.u32 %s110, 1
        %s308 = smul.addr %s307, 8
        %s309 = scalar_lea.vmem [#allocation5], %s308
        // Predicated region
        $region37: #{tpu_custom_call.1} parent=31 // pred_check
          %p310 = pneg %p120
        $region38: #{tpu_custom_call.1} parent=31 // pred_check_branch
          %312 = sbr.rel (%p310) target = $region40
        $region39: #{tpu_custom_call.1} parent=31 // pred_region
          %s314 = ssub.s32 128, 128
          %315 = vsyncadd %s306, %s314
          %s316 = sadd.s32 %s23, %s22
          %s317 = smul.addr %s316, 128
          %s318 = scalar_lea.hbm %s3, %s317
          %s320 = sshll.u32 %s309, 4
          %s321 = int_to_ptr.vmem [resolvable:$true] %s320
          %323 = dma.vmem_to_hbm [thread:$0]  %s321, 128, %s318, %s306
        $region40: #{tpu_custom_call.1} parent=31 // pred_fallthru
          _
      $region32: #{tpu_custom_call.1} parent=5 // pred_fallthru
        _
      %p324 = scmp.le.s32.totalorder 2, %s13
      // Predicated region
      $region41: #{tpu_custom_call.1} parent=5 // pred_check
        %p325 = pneg %p324
      $region42: #{tpu_custom_call.1} parent=5 // pred_check_branch
        %327 = sbr.rel (%p325) target = $region44
      $region43: #{tpu_custom_call.1} parent=5 // pred_region
        %s328 = ssub.s32 %s13, 2
        // Predicated region
        $region45: #{tpu_custom_call.1} parent=43 // pred_check
          %p329 = pneg %p126
        $region46: #{tpu_custom_call.1} parent=43 // pred_check_branch
          %331 = sbr.rel (%p329) target = $region48
        $region47: #{tpu_custom_call.1} parent=43 // pred_region
          %s332 = sand.u32 %s111, 1
          %s333 = scalar_lea.sflag [#allocation4], %s332
          %s334 = sand.u32 %s111, 1
          %s335 = smul.addr %s334, 8
          %s336 = scalar_lea.vmem [#allocation5], %s335
          %337 = dma.done %s333, 128
        $region48: #{tpu_custom_call.1} parent=43 // pred_fallthru
          _
      $region44: #{tpu_custom_call.1} parent=5 // pred_fallthru
        _
    $region6: #{tpu_custom_call.1} parent=1 // loop_footer
      %s17 = sadd.s32 1, %s13
    $region7: #{tpu_custom_call.1} parent=1 // loop_footer_branch
      %12 = sbr.rel target = $region3
    $region8: #{tpu_custom_call.1} parent=1 // loop_exit
      _
    %338 = vsyncpa [#allocation3], 1
    %s339 = scalar_lea.sflag [#allocation3], 1
    %340 = vsyncpa %s339, 1
    %341 = vsyncpa [#allocation4], 1
    %s342 = scalar_lea.sflag [#allocation4], 1
    %343 = vsyncpa %s342, 1

</llo_original>
